<compile_context>
chip_gen: v6e
topology: v6e:2x2x1
jax: 0.10.0
libtpu: 0.0.40
codegen_flags: <defaults>
</compile_context>

<pallas_src>
import jax
import jax.numpy as jnp
from jax.experimental import pallas as pl
from jax.experimental.pallas import tpu as pltpu


def _round_up(n: int, m: int) -> int:
    return ((n + m - 1) // m) * m


def linear_kernel(x_ref, w_ref, b_ref, o_ref):
    # Hot path: bf16 x bf16 MXU matmul with f32 accumulation, f32 bias add,
    # lane-dense (multiple of 128) f32 store.
    acc = jnp.dot(x_ref[...], w_ref[...], preferred_element_type=jnp.float32)
    o_ref[...] = (acc + b_ref[...]).astype(o_ref.dtype)


def encoder_forward(x, weight, bias):
    """Pallas equivalent of nn.Linear(num_g, 200).forward(x).

    x:      (B, num_g) float32
    weight: (out_dim, num_g) float32   (PyTorch Linear layout)
    bias:   (out_dim,) float32
    returns (B, out_dim) float32
    """
    B, num_g = x.shape
    out_dim = weight.shape[0]

    # ---- layout prep (wrapper-side glue, outside the kernel) ----
    # Lane-dense output width: pad 200 -> 256.
    out_pad = _round_up(out_dim, 128)
    w_t = jnp.zeros((num_g, out_pad), jnp.bfloat16)
    w_t = w_t.at[:, :out_dim].set(weight.T.astype(jnp.bfloat16))
    b_pad = jnp.zeros((1, out_pad), jnp.float32)
    b_pad = b_pad.at[:, :out_dim].set(bias.reshape(1, out_dim))

    # Batch tiling: cap the tile at 512 rows; pad B to a multiple of the tile
    # (multiple of 16 so bf16 sublane packing stays aligned).
    tile_b = 512 if B >= 512 else _round_up(B, 16)
    b_padded = _round_up(B, tile_b)

    x_bf = x.astype(jnp.bfloat16)
    if b_padded != B:
        x_full = jnp.zeros((b_padded, num_g), jnp.bfloat16)
        x_bf = x_full.at[:B, :].set(x_bf)

    grid = (b_padded // tile_b,)

    out = pl.pallas_call(
        linear_kernel,
        out_shape=jax.ShapeDtypeStruct((b_padded, out_pad), jnp.float32),
        grid_spec=pltpu.PrefetchScalarGridSpec(
            num_scalar_prefetch=0,
            grid=grid,
            in_specs=[
                # x: tiled over the batch axis.
                pl.BlockSpec((tile_b, num_g), lambda i: (i, 0)),
                # weight / bias: VMEM-resident across all batch tiles.
                pl.BlockSpec((num_g, out_pad), lambda i: (0, 0)),
                pl.BlockSpec((1, out_pad), lambda i: (0, 0)),
            ],
            out_specs=pl.BlockSpec((tile_b, out_pad), lambda i: (i, 0)),
        ),
        compiler_params=pltpu.CompilerParams(
            # Batch tiles are independent -> shard across cores on v7x.
            dimension_semantics=("parallel",),
            vmem_limit_bytes=32 * 1024 * 1024,
        ),
    )(x_bf, w_t, b_pad)

    # Drop batch padding and the zero-padded output columns.
    return out[:B, :out_dim]


# TODO(synk): at B=8 this layer is pure launch/DMA overhead; in a real model the
# consumer of fc1's output (activation / next matmul) should be fused into this
# kernel body instead of emitting a standalone pallas_call.

if __name__ == "__main__":
    # Small shapes consistent with the module: num_g = 32 features, batch = 8.
    num_g = 32
    hid = 16          # unused by the module's forward (fc1 only), kept for parity
    batch = 8
    out_dim = 200

    key = jax.random.PRNGKey(0)
    kx, kw, kb = jax.random.split(key, 3)

    # Deterministic parameter init (mimics PyTorch Linear's uniform init bound).
    bound = 1.0 / jnp.sqrt(num_g)
    w = jax.random.uniform(kw, (out_dim, num_g), jnp.float32, -bound, bound)  # PyTorch layout
    b = jax.random.uniform(kb, (out_dim,), jnp.float32, -bound, bound)

    x = jax.random.normal(kx, (batch, num_g), jnp.float32)

    out = encoder_forward(x, w, b)
    out = jax.block_until_ready(out)
    assert out.shape == (batch, out_dim)
    assert out.dtype == jnp.float32

    # Tight check against a reference that uses the same bf16-input / f32-accum path.
    ref_bf16 = (
        jnp.dot(x.astype(jnp.bfloat16), w.T.astype(jnp.bfloat16),
                preferred_element_type=jnp.float32)
        + b.reshape(1, out_dim)
    )
    assert jnp.allclose(out, ref_bf16, atol=1e-4, rtol=1e-4)

    # Loose sanity check against the full-f32 reference (bf16 input rounding only).
    ref_f32 = x @ w.T + b.reshape(1, out_dim)
    assert jnp.allclose(out, ref_f32, atol=3e-2, rtol=3e-2)

    print("KERNEL_OK")
</pallas_src>

<mosaic_0001>
module attributes {stable_mosaic.version = 11 : i64} {
  func.func @linear_kernel(%arg0: i32, %arg1: memref<16x32xbf16, #tpu.memory_space<vmem>>, %arg2: memref<32x256xbf16, #tpu.memory_space<vmem>>, %arg3: memref<1x256xf32, #tpu.memory_space<vmem>>, %arg4: memref<16x256xf32, #tpu.memory_space<vmem>>) attributes {dimension_semantics = [#tpu.dimension_semantics<parallel>], iteration_bounds = array<i64: 1>, scalar_prefetch = 0 : i64, scratch_operands = 0 : i64, tpu.core_type = #tpu.core_type<tc>, window_params = [{transform_indices = @transform_0, window_bounds = array<i64: 16, 32>}, {pipeline_mode = #tpu.pipeline_mode<synchronous>, transform_indices = @transform_1, window_bounds = array<i64: 32, 256>}, {pipeline_mode = #tpu.pipeline_mode<synchronous>, transform_indices = @transform_2, window_bounds = array<i64: 1, 256>}, {transform_indices = @transform_3, window_bounds = array<i64: 16, 256>}]} {
    %c0 = arith.constant 0 : index
    %c0_0 = arith.constant 0 : index
    %0 = vector.load %arg1[%c0, %c0_0] : memref<16x32xbf16, #tpu.memory_space<vmem>>, vector<16x32xbf16>
    %c0_1 = arith.constant 0 : index
    %c0_2 = arith.constant 0 : index
    %1 = vector.load %arg2[%c0_1, %c0_2] : memref<32x256xbf16, #tpu.memory_space<vmem>>, vector<32x256xbf16>
    %cst = arith.constant dense<0.000000e+00> : vector<16x256xf32>
    %2 = tpu.matmul %0, %1, %cst {dimension_numbers = #tpu.dot_dimension_numbers<[1], [0], [0], [1], [0, 0, 1, 1], [], []>} : vector<16x32xbf16>, vector<32x256xbf16>, vector<16x256xf32> -> vector<16x256xf32>
    %c0_3 = arith.constant 0 : index
    %c0_4 = arith.constant 0 : index
    %3 = vector.load %arg3[%c0_3, %c0_4] : memref<1x256xf32, #tpu.memory_space<vmem>>, vector<1x256xf32>
    %4 = vector.broadcast %3 : vector<1x256xf32> to vector<16x256xf32>
    %5 = arith.addf %2, %4 : vector<16x256xf32>
    %c0_5 = arith.constant 0 : index
    %c0_6 = arith.constant 0 : index
    %6 = vector.load %arg4[%c0_5, %c0_6] : memref<16x256xf32, #tpu.memory_space<vmem>>, vector<16x256xf32>
    tpu.vector_store %arg4[%c0_5, %c0_6], %5 {strides = array<i32>} : memref<16x256xf32, #tpu.memory_space<vmem>>, vector<16x256xf32>,
    return
  }
  func.func @transform_0(%arg0: i32) -> (i32, i32) {
    %c0_i32 = arith.constant 0 : i32
    %c0_i32_0 = arith.constant 0 : i32
    return %arg0, %c0_i32 : i32, i32
  }
  func.func @transform_1(%arg0: i32) -> (i32, i32) {
    %c0_i32 = arith.constant 0 : i32
    %c0_i32_0 = arith.constant 0 : i32
    %c0_i32_1 = arith.constant 0 : i32
    return %c0_i32, %c0_i32_0 : i32, i32
  }
  func.func @transform_2(%arg0: i32) -> (i32, i32) {
    %c0_i32 = arith.constant 0 : i32
    %c0_i32_0 = arith.constant 0 : i32
    %c0_i32_1 = arith.constant 0 : i32
    return %c0_i32, %c0_i32_0 : i32, i32
  }
  func.func @transform_3(%arg0: i32) -> (i32, i32) {
    %c0_i32 = arith.constant 0 : i32
    %c0_i32_0 = arith.constant 0 : i32
    return %arg0, %c0_i32 : i32, i32
  }
}

</mosaic_0001>

<llo_original>
// kernel: tpu_custom_call.1
$region0: #{tpu_custom_call.1}
  #allocation0 [shape = 'u32[]', space=smem, size = 0x4, offset = 0x4, fixed_abs, tag = 'smem constant byte address 0x4 - core index']
  #allocation1 [shape = 'u32[144,128]{1,0:T(1,128)}', space=vmem, size = 0x12000, scoped, tag = 'internal scratch']
  %s0 = inlined_call_operand.hbm [shape: bf16[16,32], index: 0, kind: input, shape index: {}]
  %s1 = inlined_call_operand.hbm [shape: bf16[32,256], index: 1, kind: input, shape index: {}]
  %s2 = inlined_call_operand.vmem [shape: f32[1,256], index: 2, kind: input, shape index: {}]
  %s3 = inlined_call_operand.hbm [shape: f32[16,256], index: 3, kind: output, shape index: {}]
  %s4 = sld [smem:[#allocation0]]
  $region30: #{tpu_custom_call.1} parent=0
    _
  %s6 = ssub.s32 1, %s4
  %s7 = scalar_select 0, %s6, %s4
  $region1: #{tpu_custom_call.1} parent=0
    #allocation2 [shape = 'u8[4096]{0}', space=vmem, size = 0x1000, scoped, tag = 'input window, operand 0, single buffered']
    #allocation3 [shape = 's32[1]{0}', space=sflag, size = 0x4, scoped, tag = 'scoped memory for tpu_custom_call.1']
    #allocation4 [shape = 's32[1]{0}', space=sflag, size = 0x4, scoped, tag = 'scoped memory for tpu_custom_call.1']
    #allocation5 [shape = 'u8[16384]{0}', space=vmem, size = 0x4000, scoped, tag = 'input window, operand 1, single buffered']
    #allocation6 [shape = 's32[1]{0}', space=sflag, size = 0x4, scoped, tag = 'scoped memory for tpu_custom_call.1']
    #allocation7 [shape = 'u8[16384]{0}', space=vmem, size = 0x4000, scoped, tag = 'output window, operand 0, single buffered']
    %8 = vsyncpa [#allocation3], 0
    %9 = vsyncpa [#allocation6], 0
    %10 = vsyncpa [#allocation4], 0
    // Predicated region
    $region2: #{tpu_custom_call.1} parent=1 // pred_check
      _
    $region3: #{tpu_custom_call.1} parent=1 // pred_check_branch
      %12 = sbr.rel (0) target = $region5
    $region4: #{tpu_custom_call.1} parent=1 // pred_region
      %s14 = ssub.s32 128, 128
      %15 = vsyncadd [#allocation3], %s14
      %s16 = sshll.u32 [#allocation2], 4
      %s17 = int_to_ptr.vmem [resolvable:$true] %s16
      %22 = dma.hbm_to_vmem [thread:$0]  %s0, 128, %s17, [#allocation3], 64, 64, 4
    $region5: #{tpu_custom_call.1} parent=1 // pred_fallthru
      _
    // Predicated region
    $region6: #{tpu_custom_call.1} parent=1 // pred_check
      _
    $region7: #{tpu_custom_call.1} parent=1 // pred_check_branch
      %24 = sbr.rel (0) target = $region9
    $region8: #{tpu_custom_call.1} parent=1 // pred_region
      %s26 = ssub.s32 512, 512
      %27 = vsyncadd [#allocation6], %s26
      %s28 = sshll.u32 [#allocation5], 4
      %s29 = int_to_ptr.vmem [resolvable:$true] %s28
      %34 = dma.hbm_to_vmem [thread:$0]  %s1, 512, %s29, [#allocation6], 128, 128, 8
    $region9: #{tpu_custom_call.1} parent=1 // pred_fallthru
      _
    // Predicated region
    $region10: #{tpu_custom_call.1} parent=1 // pred_check
      _
    $region11: #{tpu_custom_call.1} parent=1 // pred_check_branch
      %36 = sbr.rel (0) target = $region13
    $region12: #{tpu_custom_call.1} parent=1 // pred_region
      _
    $region13: #{tpu_custom_call.1} parent=1 // pred_fallthru
      _
    // Predicated region
    $region14: #{tpu_custom_call.1} parent=1 // pred_check
      _
    $region15: #{tpu_custom_call.1} parent=1 // pred_check_branch
      %38 = sbr.rel (0) target = $region17
    $region16: #{tpu_custom_call.1} parent=1 // pred_region
      %39 = dma.done [#allocation3], 128
    $region17: #{tpu_custom_call.1} parent=1 // pred_fallthru
      _
    // Predicated region
    $region18: #{tpu_custom_call.1} parent=1 // pred_check
      _
    $region19: #{tpu_custom_call.1} parent=1 // pred_check_branch
      %41 = sbr.rel (0) target = $region21
    $region20: #{tpu_custom_call.1} parent=1 // pred_region
      %42 = dma.done [#allocation6], 512
    $region21: #{tpu_custom_call.1} parent=1 // pred_fallthru
      _
    %v44 = vld [vmem:[#allocation2] sm:$0xf]
    %v45 = vld [vmem:[#allocation2 + $0x4] sm:$0xf]
    %v46 = vld [vmem:[#allocation5] sm:$0xff]
    %v47 = vld [vmem:[#allocation5 + $0x8] sm:$0xff]
    %v48 = vld [vmem:[#allocation5 + $0x10] sm:$0xff]
    %v49 = vld [vmem:[#allocation5 + $0x18] sm:$0xff]
    %v50 = vld [vmem:[%s2] sm:$0x3]
    %v52 = vlaneseq
    %v53 = vshrl.u32 %v52, 7
    %v54 = vsub.s32 0, %v53
    %v55 = vrot.slane %v50, %v54
    %v56 = vlaneseq
    %v57 = vshrl.u32 %v56, 7
    %v58 = vsub.s32 1, %v57
    %v59 = vrot.slane %v50, %v58
    %v64 = vunpack.c.l.b16 %v44
    %v65 = vunpack.c.l.b16 %v45
    %v66 = vpack.c.b16 %v65, %v64
    %v71 = vunpack.c.l.b16 %v46
    %v72 = vunpack.c.h.b16 %v46
    %v73 = vunpack.c.l.b16 %v47
    %v74 = vunpack.c.h.b16 %v47
    %v75 = vunpack.c.l.b16 %v48
    %v76 = vunpack.c.h.b16 %v48
    %v77 = vunpack.c.l.b16 %v49
    %v78 = vunpack.c.h.b16 %v49
    %v79 = vpack.c.b16 %v73, %v71
    %v80 = vpack.c.b16 %v74, %v72
    %v81 = vpack.c.b16 %v77, %v75
    %v82 = vpack.c.b16 %v78, %v76
    %vm87 = vcmask 261120
    %v89 = vsel %vm87, %v66, 0
    %91 = vmatprep.subr.bf16.mxu0 0
    %92 = vmatpush1.bf16.msra.mxu0 0
    %93 = vmatprep.subr.bf16.mxu0 0
    %94 = vmatpush1.bf16.msra.mxu0 0
    %95 = vmatprep.subr.bf16.mxu0 0
    %96 = vmatpush1.bf16.msra.mxu0 0
    %97 = vmatprep.subr.bf16.mxu0 0
    %98 = vmatpush1.bf16.msra.mxu0 0
    %99 = vmatprep.subr.bf16.mxu0 0
    %100 = vmatpush1.bf16.msra.mxu0 0
    %101 = vmatprep.subr.bf16.mxu0 0
    %102 = vmatpush1.bf16.msra.mxu0 0
    %103 = vmatprep.subr.bf16.mxu0 %v82
    %104 = vmatpush1.bf16.msra.mxu0 %v81
    %105 = vmatprep.subr.bf16.mxu0 %v80
    %106 = vmatpush1.bf16.msra.mxu0 %v79
    %107 = vmatprep.subr.bf16.mxu0 0
    %108 = vmatpush2.bf16.msra.mxu0 0
    %109 = vmatprep.subr.bf16.mxu0 0
    %110 = vmatpush2.bf16.msra.mxu0 0
    %111 = vmatprep.subr.bf16.mxu0 0
    %112 = vmatpush2.bf16.msra.mxu0 0
    %113 = vmatprep.subr.bf16.mxu0 0
    %114 = vmatpush2.bf16.msra.mxu0 0
    %115 = vmatprep.subr.bf16.mxu0 0
    %116 = vmatpush2.bf16.msra.mxu0 0
    %117 = vmatprep.subr.bf16.mxu0 0
    %118 = vmatpush2.bf16.msra.mxu0 0
    %119 = vmatprep.subr.bf16.mxu0 0
    %120 = vmatpush2.bf16.msra.mxu0 0
    %121 = vmatprep.subr.bf16.mxu0 0
    %122 = vmatpush2.bf16.msra.mxu0 0
    %123 = vmatprep.mubr.bf16.mxu0 0
    %124 = vmatmul.mubr.bf16.gmra.mxu0 %v89
    %v125 = vpop.f32.mrf.mxu0
    %v126 = vadd.f32 %v55, %v125
    %v127 = vpop.f32.mrf.mxu0
    %v128 = vadd.f32 %v59, %v127
    %v129 = vpop.f32.mrf.mxu0
    %v130 = vadd.f32 %v55, %v129
    %v131 = vpop.f32.mrf.mxu0
    %v132 = vadd.f32 %v59, %v131
    %133 = vdwg.mxu0
    %134 = vst [vmem:[#allocation7] sm:$0xff] %v126
    %135 = vst [vmem:[#allocation7 + $0x8] sm:$0xff] %v128
    %136 = vst [vmem:[#allocation7 + $0x10] sm:$0xff] %v130
    %137 = vst [vmem:[#allocation7 + $0x18] sm:$0xff] %v132
    // Predicated region
    $region22: #{tpu_custom_call.1} parent=1 // pred_check
      _
    $region23: #{tpu_custom_call.1} parent=1 // pred_check_branch
      %139 = sbr.rel (0) target = $region25
    $region24: #{tpu_custom_call.1} parent=1 // pred_region
      %s141 = ssub.s32 512, 512
      %142 = vsyncadd [#allocation4], %s141
      %s143 = sshll.u32 [#allocation7], 4
      %s144 = int_to_ptr.vmem [resolvable:$true] %s143
      %149 = dma.vmem_to_hbm [thread:$0]  %s144, 512, %s3, [#allocation4], 256, 256, 16
    $region25: #{tpu_custom_call.1} parent=1 // pred_fallthru
      _
    // Predicated region
    $region26: #{tpu_custom_call.1} parent=1 // pred_check
      _
    $region27: #{tpu_custom_call.1} parent=1 // pred_check_branch
      %151 = sbr.rel (0) target = $region29
    $region28: #{tpu_custom_call.1} parent=1 // pred_region
      %152 = dma.done [#allocation4], 512
    $region29: #{tpu_custom_call.1} parent=1 // pred_fallthru
      _
    %153 = vsyncpa [#allocation3], 1
    %154 = vsyncpa [#allocation6], 1
    %155 = vsyncpa [#allocation4], 1

</llo_original>
